<compile_context>
chip_gen: v7x
topology: tpu7x:2x2x1
jax: 0.10.0
libtpu: 0.0.40
codegen_flags: <defaults>
</compile_context>

<pallas_src>
import math

import jax
import jax.numpy as jnp
from jax.experimental import pallas as pl
from jax.experimental.pallas import tpu as pltpu

LAMDA = 0.5        # self.lamda in the PyTorch module
EPSILON = 0.1      # self.epsilon (only used in update_omega, not in forward)

LANES = 128
SUBLANES = 8
MAX_BLOCK_ROWS = 8192                 # 8192 x 128: 4 MiB f32 / 2 MiB bf16 per input per step
VMEM_LIMIT_BYTES = 48 * 1024 * 1024
CACHE_DTYPE = jnp.bfloat16            # storage dtype for omega / prev_opt_theta slabs


def _round_up(x, m):
    return ((x + m - 1) // m) * m


def _cdiv(a, b):
    return -(-a // b)


def _num_tensorcores():
    """Best-effort TensorCore count (2 on v7x, 1 on v5e/v6e). Falls back to 1."""
    n = 1
    try:
        info = pltpu.get_tpu_info()
        for attr in ("num_cores", "core_count", "num_tensorcores", "tensorcore_count"):
            v = getattr(info, attr, None)
            if isinstance(v, int) and v > 0:
                n = v
                break
    except Exception:
        n = 1
    # Clamp: at most the 2 TCs of a v7x chip; never go below 1.
    return max(1, min(int(n), 2))


def _slab_geometry(n_elems, num_partials):
    """Static (trace-time) tiling geometry minimizing zero-pad waste."""
    rows = max(1, _cdiv(n_elems, LANES))
    rows_per_part = _cdiv(rows, num_partials)
    # Pick the block count first, then spread rows evenly (pad <= 7 rows/part),
    # instead of fixing block_rows and padding up to it.
    blocks_per_part = max(1, _cdiv(rows_per_part, MAX_BLOCK_ROWS))
    block_rows = _round_up(_cdiv(rows_per_part, blocks_per_part), SUBLANES)
    rows_padded = num_partials * blocks_per_part * block_rows
    return block_rows, blocks_per_part, rows_padded


def _flatten_to_slab(params, rows_padded, dtype):
    """Flatten + concat + zero-pad all params into a (rows_padded, 128) slab.

    Zero padding contributes exactly 0 to the loss (omega pad = 0, diff pad = 0).
    """
    flat = jnp.concatenate([jnp.reshape(p, (-1,)).astype(jnp.float32) for p in params])
    n = flat.shape[0]
    flat = jnp.pad(flat, (0, rows_padded * LANES - n))
    return flat.reshape(rows_padded, LANES).astype(dtype)


def _ppir_kernel(omega_ref, cur_ref, prev_ref, out_ref):
    """Accumulate omega * (cur - prev)^2 directly into the resident output block.

    Grid = (partial/core index, reduction sweep).  The output block index only
    depends on the partial index, so the (1, 8, 128) output tile stays resident
    in VMEM across the reduction axis and acts as the accumulator itself.
    """
    i = pl.program_id(1)

    @pl.when(i == 0)
    def _():
        out_ref[...] = jnp.zeros_like(out_ref)

    # Cached slabs are stored in bf16 (HBM-bandwidth optimization); upcast
    # in-vreg and keep all arithmetic/accumulation in f32.
    omega = omega_ref[...].astype(jnp.float32)
    prev = prev_ref[...].astype(jnp.float32)
    d = cur_ref[...].astype(jnp.float32) - prev
    contrib = omega * (d * d)
    # Fold (block_rows, 128) -> (8, 128): the reshape only splits the sublane
    # axis (block_rows is a multiple of 8), so no data movement; the sum is
    # plain VALU adds across vregs.
    out_ref[...] += jnp.sum(
        contrib.reshape(-1, SUBLANES, LANES), axis=0
    ).reshape(1, SUBLANES, LANES)


def _build_pallas_loss(block_rows, blocks_per_part, num_partials, rows_padded):
    tile = pl.BlockSpec(
        (block_rows, LANES),
        lambda p, i: (p * blocks_per_part + i, 0),
    )

    n_padded = rows_padded * LANES
    cost = pl.CostEstimate(
        flops=4 * n_padded,                      # sub, mul, mul, reduce-add
        transcendentals=0,
        bytes_accessed=n_padded * (4 + 2 + 2)    # f32 cur + bf16 omega + bf16 prev
        + num_partials * SUBLANES * LANES * 4,   # output partials
    )

    lead_sem = pltpu.CORE_PARALLEL if num_partials > 1 else pltpu.ARBITRARY

    call = pl.pallas_call(
        _ppir_kernel,
        out_shape=jax.ShapeDtypeStruct((num_partials, SUBLANES, LANES), jnp.float32),
        grid_spec=pltpu.PrefetchScalarGridSpec(
            num_scalar_prefetch=0,
            grid=(num_partials, blocks_per_part),
            in_specs=[tile, tile, tile],
            out_specs=pl.BlockSpec((1, SUBLANES, LANES), lambda p, i: (p, 0, 0)),
        ),
        compiler_params=pltpu.CompilerParams(
            dimension_semantics=(lead_sem, pltpu.ARBITRARY),
            vmem_limit_bytes=VMEM_LIMIT_BYTES,
        ),
        cost_estimate=cost,
    )

    @jax.jit
    def loss_fn(omega_slab, prev_slab, cur_thetas):
        # Flatten the current parameters INSIDE jit so XLA fuses the
        # concat/pad/reshape with the kernel's input consumption (no extra
        # eager per-leaf dispatch / full read+write pass per forward call).
        cur_slab = _flatten_to_slab(cur_thetas, rows_padded, jnp.float32)
        partials = call(omega_slab, cur_slab, prev_slab)
        # Tiny final cross-lane sum + lamda/2 scaling outside the kernel.
        return (LAMDA * 0.5) * jnp.sum(partials)

    return loss_fn


def make_ppir_forward(omega, prev_opt_thetas):
    """Pre-flatten the cached regularizer state (omega, prev_opt_thetas) once
    into bf16 slabs (they only change at task boundaries) and return
    forward(cur_thetas) -> scalar loss, mirroring PPIR.forward(model)."""
    n_elems = sum(int(math.prod(p.shape)) for p in prev_opt_thetas)
    num_partials = _num_tensorcores()
    block_rows, blocks_per_part, rows_padded = _slab_geometry(n_elems, num_partials)
    omega_slab = _flatten_to_slab(omega, rows_padded, CACHE_DTYPE)
    prev_slab = _flatten_to_slab(prev_opt_thetas, rows_padded, CACHE_DTYPE)
    loss_fn = _build_pallas_loss(block_rows, blocks_per_part, num_partials, rows_padded)

    def forward(cur_thetas):
        return loss_fn(omega_slab, prev_slab, list(cur_thetas))

    return forward


def ppir_forward(omega, cur_thetas, prev_opt_thetas):
    """One-shot convenience wrapper (builds the cached state each call)."""
    return make_ppir_forward(omega, prev_opt_thetas)(cur_thetas)


# TODO(synk): __init__ / update_omega (deepcopy, grad-based W update, omega refresh)
# are host-side state bookkeeping in the PyTorch module; only forward() is a kernel.


def _ppir_reference(omega, cur_thetas, prev_opt_thetas, cache_dtype=jnp.float32):
    """Pure-JAX reference. `cache_dtype` mimics the bf16 storage of omega/prev."""
    loss = jnp.float32(0.0)
    for o, c, p in zip(omega, cur_thetas, prev_opt_thetas):
        o32 = o.astype(cache_dtype).astype(jnp.float32)
        p32 = p.astype(cache_dtype).astype(jnp.float32)
        c32 = c.astype(jnp.float32)
        loss += (LAMDA / 2.0) * jnp.sum(o32 * (c32 - p32) ** 2)
    return loss


def _make_params(param_shapes, key):
    keys = jax.random.split(key, 3 * len(param_shapes))
    cur = [jax.random.normal(keys[3 * i + 0], s, jnp.float32) * 0.1
           for i, s in enumerate(param_shapes)]
    prev = [jax.random.normal(keys[3 * i + 1], s, jnp.float32) * 0.1
            for i, s in enumerate(param_shapes)]
    # omega is nonnegative importance (W / ((dp)^2 + eps)); use |N(0,1)|.
    omg = [jnp.abs(jax.random.normal(keys[3 * i + 2], s, jnp.float32))
           for i, s in enumerate(param_shapes)]
    return omg, cur, prev


if __name__ == "__main__":
    key = jax.random.PRNGKey(0)
    k_small, k_big = jax.random.split(key)

    # Case 1: tiny synthetic "model": conv w (4,4,3,3), conv b (4,), fc w (8,32), fc b (8,)
    shapes_small = [(4, 4, 3, 3), (4,), (8, 32), (8,)]
    omega_s, cur_s, prev_s = _make_params(shapes_small, k_small)
    fwd_s = make_ppir_forward(omega_s, prev_s)
    loss_s = jax.block_until_ready(fwd_s(cur_s))
    ref_s_cached = jax.block_until_ready(_ppir_reference(omega_s, cur_s, prev_s, CACHE_DTYPE))
    ref_s_f32 = jax.block_until_ready(_ppir_reference(omega_s, cur_s, prev_s))
    # Tight check vs. a reference using the same bf16-stored cached state.
    assert jnp.allclose(loss_s, ref_s_cached, rtol=1e-4, atol=1e-5), (loss_s, ref_s_cached)
    # Loose check vs. the pure-f32 reference (bf16 cache rounding only).
    assert jnp.allclose(loss_s, ref_s_f32, rtol=1e-2, atol=1e-4), (loss_s, ref_s_f32)

    # Case 2: moderately larger params to exercise multi-row blocks.
    shapes_big = [(64, 512), (512,), (128, 64, 3, 3), (128,)]
    omega_b, cur_b, prev_b = _make_params(shapes_big, k_big)
    fwd_b = make_ppir_forward(omega_b, prev_b)
    loss_b = jax.block_until_ready(fwd_b(cur_b))
    ref_b_cached = jax.block_until_ready(_ppir_reference(omega_b, cur_b, prev_b, CACHE_DTYPE))
    ref_b_f32 = jax.block_until_ready(_ppir_reference(omega_b, cur_b, prev_b))
    assert jnp.allclose(loss_b, ref_b_cached, rtol=1e-4, atol=1e-5), (loss_b, ref_b_cached)
    assert jnp.allclose(loss_b, ref_b_f32, rtol=1e-2, atol=1e-4), (loss_b, ref_b_f32)

    print("KERNEL_OK")
</pallas_src>

<mosaic_0001>
module attributes {stable_mosaic.version = 11 : i64} {
  func.func @_ppir_kernel(%arg0: i32, %arg1: i32, %arg2: memref<8x128xbf16, #tpu.memory_space<vmem>>, %arg3: memref<8x128xf32, #tpu.memory_space<vmem>>, %arg4: memref<8x128xbf16, #tpu.memory_space<vmem>>, %arg5: memref<1x8x128xf32, #tpu.memory_space<vmem>>) attributes {dimension_semantics = [#tpu.dimension_semantics<arbitrary>, #tpu.dimension_semantics<arbitrary>], iteration_bounds = array<i64: 1, 1>, scalar_prefetch = 0 : i64, scratch_operands = 0 : i64, tpu.core_type = #tpu.core_type<tc>, window_params = [{transform_indices = @transform_0, window_bounds = array<i64: 8, 128>}, {transform_indices = @transform_1, window_bounds = array<i64: 8, 128>}, {transform_indices = @transform_2, window_bounds = array<i64: 8, 128>}, {transform_indices = @transform_3, window_bounds = array<i64: 1, 8, 128>}]} {
    %c0_i32 = arith.constant 0 : i32
    %0 = arith.cmpi eq, %arg1, %c0_i32 : i32
    %1 = arith.extui %0 : i1 to i32
    %c0_i32_0 = arith.constant 0 : i32
    %2 = arith.cmpi ne, %1, %c0_i32_0 : i32
    scf.if %2 {
      %cst_12 = arith.constant 0.000000e+00 : f32
      %17 = vector.broadcast %cst_12 : f32 to vector<1x8x128xf32>
      %c0_13 = arith.constant 0 : index
      %c0_14 = arith.constant 0 : index
      %c0_15 = arith.constant 0 : index
      %18 = vector.load %arg5[%c0_13, %c0_14, %c0_15] : memref<1x8x128xf32, #tpu.memory_space<vmem>>, vector<1x8x128xf32>
      tpu.vector_store %arg5[%c0_13, %c0_14, %c0_15], %17 {strides = array<i32>} : memref<1x8x128xf32, #tpu.memory_space<vmem>>, vector<1x8x128xf32>,
    } else {
    }
    %c0 = arith.constant 0 : index
    %c0_1 = arith.constant 0 : index
    %3 = vector.load %arg2[%c0, %c0_1] : memref<8x128xbf16, #tpu.memory_space<vmem>>, vector<8x128xbf16>
    %4 = arith.extf %3 : vector<8x128xbf16> to vector<8x128xf32>
    %c0_2 = arith.constant 0 : index
    %c0_3 = arith.constant 0 : index
    %5 = vector.load %arg4[%c0_2, %c0_3] : memref<8x128xbf16, #tpu.memory_space<vmem>>, vector<8x128xbf16>
    %6 = arith.extf %5 : vector<8x128xbf16> to vector<8x128xf32>
    %c0_4 = arith.constant 0 : index
    %c0_5 = arith.constant 0 : index
    %7 = vector.load %arg3[%c0_4, %c0_5] : memref<8x128xf32, #tpu.memory_space<vmem>>, vector<8x128xf32>
    %8 = arith.subf %7, %6 : vector<8x128xf32>
    %9 = arith.mulf %8, %8 : vector<8x128xf32>
    %10 = arith.mulf %4, %9 : vector<8x128xf32>
    %c0_6 = arith.constant 0 : index
    %c0_7 = arith.constant 0 : index
    %c0_8 = arith.constant 0 : index
    %11 = vector.load %arg5[%c0_6, %c0_7, %c0_8] : memref<1x8x128xf32, #tpu.memory_space<vmem>>, vector<1x8x128xf32>
    %12 = vector.shape_cast %10 : vector<8x128xf32> to vector<1x8x128xf32>
    %cst = arith.constant dense<0.000000e+00> : vector<8x128xf32>
    %13 = vector.multi_reduction <add>, %12, %cst [0] : vector<1x8x128xf32> to vector<8x128xf32>
    %14 = vector.shape_cast %13 : vector<8x128xf32> to vector<1x8x128xf32>
    %15 = arith.addf %11, %14 : vector<1x8x128xf32>
    %c0_9 = arith.constant 0 : index
    %c0_10 = arith.constant 0 : index
    %c0_11 = arith.constant 0 : index
    %16 = vector.load %arg5[%c0_9, %c0_10, %c0_11] : memref<1x8x128xf32, #tpu.memory_space<vmem>>, vector<1x8x128xf32>
    tpu.vector_store %arg5[%c0_9, %c0_10, %c0_11], %15 {strides = array<i32>} : memref<1x8x128xf32, #tpu.memory_space<vmem>>, vector<1x8x128xf32>,
    return
  }
  func.func @transform_0(%arg0: i32, %arg1: i32) -> (i32, i32) {
    %c1_i32 = arith.constant 1 : i32
    %0 = arith.muli %arg0, %c1_i32 : i32
    %1 = arith.addi %0, %arg1 : i32
    %c0_i32 = arith.constant 0 : i32
    %c0_i32_0 = arith.constant 0 : i32
    return %1, %c0_i32 : i32, i32
  }
  func.func @transform_1(%arg0: i32, %arg1: i32) -> (i32, i32) {
    %c1_i32 = arith.constant 1 : i32
    %0 = arith.muli %arg0, %c1_i32 : i32
    %1 = arith.addi %0, %arg1 : i32
    %c0_i32 = arith.constant 0 : i32
    %c0_i32_0 = arith.constant 0 : i32
    return %1, %c0_i32 : i32, i32
  }
  func.func @transform_2(%arg0: i32, %arg1: i32) -> (i32, i32) {
    %c1_i32 = arith.constant 1 : i32
    %0 = arith.muli %arg0, %c1_i32 : i32
    %1 = arith.addi %0, %arg1 : i32
    %c0_i32 = arith.constant 0 : i32
    %c0_i32_0 = arith.constant 0 : i32
    return %1, %c0_i32 : i32, i32
  }
  func.func @transform_3(%arg0: i32, %arg1: i32) -> (i32, i32, i32) {
    %c0_i32 = arith.constant 0 : i32
    %c0_i32_0 = arith.constant 0 : i32
    %c0_i32_1 = arith.constant 0 : i32
    return %arg0, %c0_i32, %c0_i32_0 : i32, i32, i32
  }
}

</mosaic_0001>

<llo_original>
// kernel: loss_fn.1
$region0: #{loss_fn.1}
  #allocation0 [shape = 'u32[]', space=smem, size = 0x4, offset = 0x4, fixed_abs, tag = 'smem constant byte address 0x4 - core index']
  #allocation1 [shape = 'u32[144,128]{1,0:T(1,128)}', space=vmem, size = 0x12000, scoped, tag = 'internal scratch']
  %s0 = inlined_call_operand.vmem [shape: bf16[8,128], index: 0, kind: input, shape index: {}]
  %s1 = inlined_call_operand.vmem [shape: f32[8,128], index: 1, kind: input, shape index: {}]
  %s2 = inlined_call_operand.vmem [shape: bf16[8,128], index: 2, kind: input, shape index: {}]
  %s3 = inlined_call_operand.vmem [shape: f32[1,8,128], index: 3, kind: output, shape index: {}]
  %s4 = sld [smem:[#allocation0]]
  $region26: #{loss_fn.1} parent=0
    _
  %s6 = ssub.s32 1, %s4
  %s7 = scalar_select 0, %s6, %s4
  // Predicated region
  $region2: #{loss_fn.1} parent=0 // pred_check
    _
  $region3: #{loss_fn.1} parent=0 // pred_check_branch
    %9 = sbr.rel (0) target = $region5
  $region4: #{loss_fn.1} parent=0 // pred_region
    %s10 = sadd.s32 0, 0
    %p11 = scmp.lt.s32.totalorder %s10, 0
    %s12 = scalar_select %p11, %s10, 0
    %s13 = smul.addr %s12, 4
    %s14 = scalar_lea.vmem %s0, %s13
    %s15 = sadd.s32 0, 0
  $region5: #{loss_fn.1} parent=0 // pred_fallthru
    _
  // Predicated region
  $region6: #{loss_fn.1} parent=0 // pred_check
    _
  $region7: #{loss_fn.1} parent=0 // pred_check_branch
    %17 = sbr.rel (0) target = $region9
  $region8: #{loss_fn.1} parent=0 // pred_region
    %s18 = sadd.s32 0, 0
    %p19 = scmp.lt.s32.totalorder %s18, 0
    %s20 = scalar_select %p19, %s18, 0
    %s21 = smul.addr %s20, 8
    %s22 = scalar_lea.vmem %s1, %s21
    %s23 = sadd.s32 0, 0
  $region9: #{loss_fn.1} parent=0 // pred_fallthru
    _
  // Predicated region
  $region10: #{loss_fn.1} parent=0 // pred_check
    _
  $region11: #{loss_fn.1} parent=0 // pred_check_branch
    %25 = sbr.rel (0) target = $region13
  $region12: #{loss_fn.1} parent=0 // pred_region
    %s26 = sadd.s32 0, 0
    %p27 = scmp.lt.s32.totalorder %s26, 0
    %s28 = scalar_select %p27, %s26, 0
    %s29 = smul.addr %s28, 4
    %s30 = scalar_lea.vmem %s2, %s29
    %s31 = sadd.s32 0, 0
  $region13: #{loss_fn.1} parent=0 // pred_fallthru
    _
  %s32 = sadd.s32 0, 0
  %p33 = scmp.lt.s32.totalorder %s32, 0
  %s34 = scalar_select %p33, %s32, 0
  %s35 = smul.addr %s34, 4
  %s36 = scalar_lea.vmem %s0, %s35
  %s37 = sadd.s32 0, 0
  %p38 = scmp.lt.s32.totalorder %s37, 0
  %s39 = scalar_select %p38, %s37, 0
  %s40 = smul.addr %s39, 8
  %s41 = scalar_lea.vmem %s1, %s40
  %s42 = sadd.s32 0, 0
  %p43 = scmp.lt.s32.totalorder %s42, 0
  %s44 = scalar_select %p43, %s42, 0
  %s45 = smul.addr %s44, 4
  %s46 = scalar_lea.vmem %s2, %s45
  %s47 = sadd.s32 0, 0
  %p48 = scmp.lt.s32.totalorder %s47, 0
  %s49 = scalar_select %p48, %s47, 0
  %s50 = smul.addr %s49, 4
  %s51 = scalar_lea.vmem %s0, %s50
  %s52 = sadd.s32 0, 0
  %s53 = sadd.s32 0, 0
  %p54 = scmp.lt.s32.totalorder %s53, 0
  %s55 = scalar_select %p54, %s53, 0
  %s56 = smul.addr %s55, 8
  %s57 = scalar_lea.vmem %s1, %s56
  %s58 = sadd.s32 0, 0
  %s59 = sadd.s32 0, 0
  %p60 = scmp.lt.s32.totalorder %s59, 0
  %s61 = scalar_select %p60, %s59, 0
  %s62 = smul.addr %s61, 4
  %s63 = scalar_lea.vmem %s2, %s62
  %s64 = sadd.s32 0, 0
  %p65 = scmp.eq.s32.totalorder 0, 0
  // Predicated region
  $region14: #{loss_fn.1} parent=0 // pred_check
    %p66 = pneg %p65
  $region15: #{loss_fn.1} parent=0 // pred_check_branch
    %68 = sbr.rel (%p66) target = $region17
  $region16: #{loss_fn.1} parent=0 // pred_region
    %69 = vst [vmem:[%s3] sm:$0xff] 0.0
  $region17: #{loss_fn.1} parent=0 // pred_fallthru
    _
  %v70 = vld [vmem:[%s51] sm:$0xf]
  %v71 = vunpack.c.l.bf16 %v70
  %v72 = vld [vmem:[%s63] sm:$0xf]
  %v73 = vunpack.c.l.bf16 %v72
  %v74 = vld [vmem:[%s57] sm:$0xff]
  %v75 = vsub.f32 %v74, %v73
  %v76 = vmul.f32 %v75, %v75
  %v77 = vmul.f32 %v71, %v76
  %v78 = vld [vmem:[%s3] sm:$0xff]
  %v79 = vadd.f32 %v77, 0.0
  %v80 = vadd.f32 %v78, %v79
  %81 = vst [vmem:[%s3] sm:$0xff] %v80
  // Predicated region
  $region18: #{loss_fn.1} parent=0 // pred_check
    _
  $region19: #{loss_fn.1} parent=0 // pred_check_branch
    %83 = sbr.rel (0) target = $region21
  $region20: #{loss_fn.1} parent=0 // pred_region
    _
  $region21: #{loss_fn.1} parent=0 // pred_fallthru
    _
  // Predicated region
  $region22: #{loss_fn.1} parent=0 // pred_check
    _
  $region23: #{loss_fn.1} parent=0 // pred_check_branch
    %85 = sbr.rel (0) target = $region25
  $region24: #{loss_fn.1} parent=0 // pred_region
    _
  $region25: #{loss_fn.1} parent=0 // pred_fallthru
    _

</llo_original>
